<compile_context>
chip_gen: v5e
topology: v5e:2x2
jax: 0.10.0
libtpu: 0.0.40
codegen_flags: <defaults>
</compile_context>

<pallas_src>
import functools

import jax
import jax.numpy as jnp
from jax.experimental import pallas as pl
from jax.experimental.pallas import tpu as pltpu


def _round_up(v, m):
    return ((v + m - 1) // m) * m


def _ceil_div(a, b):
    return -(-a // b)


def _pad2d(a, rows, cols):
    if a.shape == (rows, cols):
        return a
    return jnp.zeros((rows, cols), a.dtype).at[: a.shape[0], : a.shape[1]].set(a)


def _ffn_kernel(x_ref, w1t_ref, b1_ref, w2_ref, b2_ref, o_ref, acc_ref):
    """One (token tile i, hidden tile k) step of x@W1 + b1 -> GELU -> @W2 + b2."""
    k = pl.program_id(1)

    @pl.when(k == 0)
    def _():
        # Seed the accumulator with the (broadcast) second bias: the epilogue is then
        # just a cast+store instead of a full (tm, E) add.
        acc_ref[...] = jnp.broadcast_to(
            b2_ref[...].astype(jnp.float32), acc_ref.shape
        )

    # First linear for this hidden tile. W1 is stored transposed (H, E), so the tile
    # is a row-contiguous (th, E) slab; contract the E axes directly on the MXU.
    h = jax.lax.dot_general(
        x_ref[...],
        w1t_ref[...],
        dimension_numbers=(((1,), (1,)), ((), ())),
        preferred_element_type=jnp.float32,
    )
    h = h + b1_ref[...].astype(jnp.float32)

    # GELU, tanh approximation: 0.5*x*(1 + tanh(sqrt(2/pi)*(x + 0.044715*x^3))), f32.
    c = jnp.float32(0.7978845608028654)  # sqrt(2/pi)
    g = 0.5 * h * (1.0 + jnp.tanh(c * (h + 0.044715 * (h * h * h))))

    # Second linear: accumulate this hidden tile's contribution into the f32 scratch.
    acc_ref[...] += jnp.dot(
        g.astype(w2_ref.dtype), w2_ref[...], preferred_element_type=jnp.float32
    )

    @pl.when(k == pl.num_programs(1) - 1)
    def _():
        o_ref[...] = acc_ref[...].astype(o_ref.dtype)


def _chip_config():
    """(tm_pref, th_pref, vmem_budget_bytes, n_token_parallel_cores) for this chip."""
    try:
        vmem_cap = int(pltpu.get_tpu_info().vmem_capacity_bytes)
    except Exception:
        vmem_cap = 128 << 20
    try:
        kind = jax.devices()[0].device_kind.lower()
    except Exception:
        kind = ""

    if "v7" in kind or vmem_cap <= (80 << 20):
        # v7x-like: ~64 MiB per TensorCore, 2 TCs. Keep ~10 MiB headroom for the
        # compiler's internal (tm, th) f32 GELU temporaries + DMA descriptors.
        budget = min(vmem_cap, 64 << 20) - (10 << 20)
        tm_pref, th_pref, n_cores = 512, 1024, 2
    elif "v6" in kind:
        budget = (vmem_cap * 85) // 100  # ~109 MiB of 128 MiB
        tm_pref, th_pref, n_cores = 1024, 1024, 1
    elif "v5" in kind:
        budget = (vmem_cap * 85) // 100
        tm_pref, th_pref, n_cores = 384, 1024, 1
    else:
        budget = (min(vmem_cap, 128 << 20) * 80) // 100
        tm_pref, th_pref, n_cores = 512, 1024, 1
    return tm_pref, th_pref, max(budget, 24 << 20), n_cores


def _vmem_bytes(tm, th, e_pad, xsz, wsz):
    """Double-buffered pipeline footprint + accumulator + in-kernel f32 temporaries."""
    return (
        2 * tm * e_pad * xsz      # x tile
        + 2 * th * e_pad * wsz    # W1^T tile
        + 2 * th * wsz            # b1 tile
        + 2 * th * e_pad * wsz    # W2 tile
        + 2 * e_pad * wsz         # b2 tile
        + 2 * tm * e_pad * xsz    # output tile
        + tm * e_pad * 4          # f32 accumulator scratch
        + 2 * tm * th * 4         # f32 h / g temporaries inside the kernel
    )


def _fit_tiles(tm, th, e_pad, xsz, wsz, budget):
    """Shrink th first (tm sets arithmetic intensity on the weight stream), tm last."""
    while _vmem_bytes(tm, th, e_pad, xsz, wsz) > budget:
        if th > 256:
            th //= 2
        elif tm > 128:
            tm = max(128, tm // 2)
        elif th > 128:
            th //= 2
        else:
            # TODO(synk): for very large embedding dims add an output-E grid axis
            # (tile W2 / out / acc over E) instead of bottoming out here.
            break
    return tm, th


@functools.partial(jax.jit, static_argnames=("tm", "th", "vmem_limit"))
def _ffn_call(x2d, w1t_p, b1_p, w2_p, b2_p, *, tm, th, vmem_limit):
    n, e = x2d.shape
    h_pad, e_pad = w1t_p.shape
    n_pad = _round_up(n, tm)

    # Zero-pad activations (exact: padded rows/cols are discarded / contribute 0).
    xp = x2d
    if (n_pad, e_pad) != (n, e):
        xp = jnp.zeros((n_pad, e_pad), x2d.dtype).at[:n, :e].set(x2d)

    xsz = jnp.dtype(x2d.dtype).itemsize
    wsz = jnp.dtype(w1t_p.dtype).itemsize
    n_token_tiles = n_pad // tm
    cost = pl.CostEstimate(
        flops=4 * n_pad * e_pad * h_pad,
        transcendentals=n_pad * h_pad,
        bytes_accessed=(
            2 * n_pad * e_pad * xsz
            + n_token_tiles * (2 * h_pad * e_pad + h_pad + e_pad) * wsz
        ),
    )

    out_pad = pl.pallas_call(
        _ffn_kernel,
        out_shape=jax.ShapeDtypeStruct((n_pad, e_pad), x2d.dtype),
        grid_spec=pltpu.PrefetchScalarGridSpec(
            num_scalar_prefetch=0,
            grid=(n_pad // tm, h_pad // th),  # hidden (reduction) axis last
            in_specs=[
                pl.BlockSpec((tm, e_pad), lambda i, k: (i, 0)),   # x token tile
                pl.BlockSpec((th, e_pad), lambda i, k: (k, 0)),   # W1^T tile (contiguous)
                pl.BlockSpec((1, th), lambda i, k: (0, k)),       # b1 hidden tile
                pl.BlockSpec((th, e_pad), lambda i, k: (k, 0)),   # W2 tile (contiguous)
                pl.BlockSpec((1, e_pad), lambda i, k: (0, 0)),    # b2
            ],
            out_specs=pl.BlockSpec((tm, e_pad), lambda i, k: (i, 0)),
            scratch_shapes=[pltpu.VMEM((tm, e_pad), jnp.float32)],
        ),
        compiler_params=pltpu.CompilerParams(
            dimension_semantics=("parallel", "arbitrary"),
            vmem_limit_bytes=vmem_limit,
        ),
        cost_estimate=cost,
    )(xp, w1t_p, b1_p, w2_p, b2_p)

    return out_pad[:n, :e]


def make_feed_forward(w1, b1, w2, b2):
    """Build a FeedForward callable.

    Pads + transposes the weights ONCE (outside the hot path). The returned function
    accepts x of shape (..., E) and returns an array of the same shape/dtype.
    """
    w1 = jnp.asarray(w1)
    b1 = jnp.asarray(b1)
    w2 = jnp.asarray(w2)
    b2 = jnp.asarray(b2)
    e, h = w1.shape
    assert w2.shape == (h, e) and b1.shape == (h,) and b2.shape == (e,)

    tm_pref, th_pref, budget, n_cores = _chip_config()

    e_pad = _round_up(e, 128)
    th0 = min(th_pref, _round_up(h, 128))
    h_pad = _round_up(h, th0)

    compute_dtype = w1.dtype
    wsz = jnp.dtype(compute_dtype).itemsize

    # One-time padding / transpose (ordinary XLA ops, never re-run per forward).
    w1t_p = _pad2d(w1.T, h_pad, e_pad)          # (H_pad, E_pad), row-contiguous tiles
    b1_p = _pad2d(b1.reshape(1, h), 1, h_pad)
    w2_p = _pad2d(w2, h_pad, e_pad)
    b2_p = _pad2d(b2.reshape(1, e), 1, e_pad)

    def apply(x):
        assert x.shape[-1] == e, f"expected last dim {e}, got {x.shape}"
        lead = x.shape[:-1]
        x2 = x.reshape(-1, e)
        if x2.dtype != compute_dtype:
            x2 = x2.astype(compute_dtype)
        n = x2.shape[0]
        xsz = jnp.dtype(compute_dtype).itemsize

        # Token tile: as large as the chip budget allows, but split so each
        # TensorCore (v7x megacore) gets at least one token tile for small N.
        tm = min(tm_pref, max(8, _round_up(_ceil_div(n, n_cores), 8)))
        tm, th = _fit_tiles(tm, th0, e_pad, xsz, wsz, budget)

        est = _vmem_bytes(tm, th, e_pad, xsz, wsz)
        vmem_limit = int(
            min(max(est + est // 2 + (4 << 20), 32 << 20), budget + (8 << 20))
        )

        out2 = _ffn_call(
            x2, w1t_p, b1_p, w2_p, b2_p, tm=tm, th=th, vmem_limit=vmem_limit
        )
        return out2.astype(x.dtype).reshape(*lead, e)

    return apply


def feed_forward_ref(x, w1, b1, w2, b2):
    h = jnp.dot(x, w1, precision=jax.lax.Precision.HIGHEST) + b1
    c = jnp.sqrt(2.0 / jnp.pi)
    g = 0.5 * h * (1.0 + jnp.tanh(c * (h + 0.044715 * h ** 3)))
    return jnp.dot(g, w2, precision=jax.lax.Precision.HIGHEST) + b2


if __name__ == "__main__":
    batch, seq, emb = 2, 8, 32
    hidden = 4 * emb

    key = jax.random.PRNGKey(0)
    kx, kw1, kb1, kw2, kb2 = jax.random.split(key, 5)

    # Deterministic synthetic parameters (Linear-like init scale).
    x = jax.random.normal(kx, (batch, seq, emb), dtype=jnp.float32)
    w1 = jax.random.normal(kw1, (emb, hidden), dtype=jnp.float32) * (1.0 / jnp.sqrt(emb))
    b1 = jax.random.normal(kb1, (hidden,), dtype=jnp.float32) * 0.01
    w2 = jax.random.normal(kw2, (hidden, emb), dtype=jnp.float32) * (1.0 / jnp.sqrt(hidden))
    b2 = jax.random.normal(kb2, (emb,), dtype=jnp.float32) * 0.01

    # 1) f32 operand path.
    ffn = make_feed_forward(w1, b1, w2, b2)
    out = ffn(x)
    jax.block_until_ready(out)
    ref = feed_forward_ref(x, w1, b1, w2, b2)
    assert out.shape == ref.shape
    assert jnp.allclose(out, ref, atol=5e-3, rtol=5e-3), "f32 mismatch vs reference"

    # 2) bf16 operand path (fast MXU path, f32 accumulation) — looser tolerance.
    ffn_bf = make_feed_forward(
        w1.astype(jnp.bfloat16), b1.astype(jnp.bfloat16),
        w2.astype(jnp.bfloat16), b2.astype(jnp.bfloat16),
    )
    out_bf = ffn_bf(x.astype(jnp.bfloat16)).astype(jnp.float32)
    jax.block_until_ready(out_bf)
    ref_bf = feed_forward_ref(
        x.astype(jnp.bfloat16).astype(jnp.float32),
        w1.astype(jnp.bfloat16).astype(jnp.float32),
        b1.astype(jnp.bfloat16).astype(jnp.float32),
        w2.astype(jnp.bfloat16).astype(jnp.float32),
        b2.astype(jnp.bfloat16).astype(jnp.float32),
    )
    assert jnp.allclose(out_bf, ref_bf, atol=5e-2, rtol=5e-2), "bf16 mismatch vs reference"

    print("KERNEL_OK")
</pallas_src>

<mosaic_0001>
module attributes {stable_mosaic.version = 11 : i64} {
  func.func @_ffn_kernel(%arg0: i32, %arg1: i32, %arg2: memref<16x128xf32, #tpu.memory_space<vmem>>, %arg3: memref<128x128xf32, #tpu.memory_space<vmem>>, %arg4: memref<1x128xf32, #tpu.memory_space<vmem>>, %arg5: memref<128x128xf32, #tpu.memory_space<vmem>>, %arg6: memref<1x128xf32, #tpu.memory_space<vmem>>, %arg7: memref<16x128xf32, #tpu.memory_space<vmem>>, %arg8: memref<16x128xf32, #tpu.memory_space<vmem>>) attributes {dimension_semantics = [#tpu.dimension_semantics<parallel>, #tpu.dimension_semantics<arbitrary>], iteration_bounds = array<i64: 1, 1>, scalar_prefetch = 0 : i64, scratch_operands = 1 : i64, tpu.core_type = #tpu.core_type<tc>, window_params = [{transform_indices = @transform_0, window_bounds = array<i64: 16, 128>}, {transform_indices = @transform_1, window_bounds = array<i64: 128, 128>}, {transform_indices = @transform_2, window_bounds = array<i64: 1, 128>}, {transform_indices = @transform_3, window_bounds = array<i64: 128, 128>}, {pipeline_mode = #tpu.pipeline_mode<synchronous>, transform_indices = @transform_4, window_bounds = array<i64: 1, 128>}, {transform_indices = @transform_5, window_bounds = array<i64: 16, 128>}]} {
    %c0_i32 = arith.constant 0 : i32
    %0 = arith.cmpi eq, %arg1, %c0_i32 : i32
    %1 = arith.extui %0 : i1 to i32
    %c0_i32_0 = arith.constant 0 : i32
    %2 = arith.cmpi ne, %1, %c0_i32_0 : i32
    scf.if %2 {
      %c0_19 = arith.constant 0 : index
      %c0_20 = arith.constant 0 : index
      %30 = vector.load %arg6[%c0_19, %c0_20] : memref<1x128xf32, #tpu.memory_space<vmem>>, vector<1x128xf32>
      %31 = vector.shape_cast %30 : vector<1x128xf32> to vector<1x128xf32>
      %32 = vector.broadcast %31 : vector<1x128xf32> to vector<16x128xf32>
      %c0_21 = arith.constant 0 : index
      %c0_22 = arith.constant 0 : index
      %33 = vector.load %arg8[%c0_21, %c0_22] : memref<16x128xf32, #tpu.memory_space<vmem>>, vector<16x128xf32>
      tpu.vector_store %arg8[%c0_21, %c0_22], %32 {strides = array<i32>} : memref<16x128xf32, #tpu.memory_space<vmem>>, vector<16x128xf32>,
    } else {
    }
    %c0 = arith.constant 0 : index
    %c0_1 = arith.constant 0 : index
    %3 = vector.load %arg2[%c0, %c0_1] : memref<16x128xf32, #tpu.memory_space<vmem>>, vector<16x128xf32>
    %c0_2 = arith.constant 0 : index
    %c0_3 = arith.constant 0 : index
    %4 = vector.load %arg3[%c0_2, %c0_3] : memref<128x128xf32, #tpu.memory_space<vmem>>, vector<128x128xf32>
    %cst = arith.constant dense<0.000000e+00> : vector<16x128xf32>
    %5 = tpu.matmul %3, %4, %cst {dimension_numbers = #tpu.dot_dimension_numbers<[1], [1], [0], [0], [0, 0, 1, 0], [], []>} : vector<16x128xf32>, vector<128x128xf32>, vector<16x128xf32> -> vector<16x128xf32>
    %c0_4 = arith.constant 0 : index
    %c0_5 = arith.constant 0 : index
    %6 = vector.load %arg4[%c0_4, %c0_5] : memref<1x128xf32, #tpu.memory_space<vmem>>, vector<1x128xf32>
    %7 = vector.broadcast %6 : vector<1x128xf32> to vector<16x128xf32>
    %8 = arith.addf %5, %7 : vector<16x128xf32>
    %cst_6 = arith.constant 5.000000e-01 : f32
    %9 = vector.broadcast %cst_6 : f32 to vector<16x128xf32>
    %10 = arith.mulf %9, %8 : vector<16x128xf32>
    %11 = arith.mulf %8, %8 : vector<16x128xf32>
    %12 = arith.mulf %11, %8 : vector<16x128xf32>
    %cst_7 = arith.constant 4.471500e-02 : f32
    %13 = vector.broadcast %cst_7 : f32 to vector<16x128xf32>
    %14 = arith.mulf %13, %12 : vector<16x128xf32>
    %15 = arith.addf %8, %14 : vector<16x128xf32>
    %cst_8 = arith.constant 0.797884583 : f32
    %16 = vector.broadcast %cst_8 : f32 to vector<16x128xf32>
    %17 = arith.mulf %16, %15 : vector<16x128xf32>
    %18 = math.tanh %17 : vector<16x128xf32>
    %cst_9 = arith.constant 1.000000e+00 : f32
    %19 = vector.broadcast %cst_9 : f32 to vector<16x128xf32>
    %20 = arith.addf %19, %18 : vector<16x128xf32>
    %21 = arith.mulf %10, %20 : vector<16x128xf32>
    %c0_10 = arith.constant 0 : index
    %c0_11 = arith.constant 0 : index
    %22 = vector.load %arg8[%c0_10, %c0_11] : memref<16x128xf32, #tpu.memory_space<vmem>>, vector<16x128xf32>
    %c0_12 = arith.constant 0 : index
    %c0_13 = arith.constant 0 : index
    %23 = vector.load %arg5[%c0_12, %c0_13] : memref<128x128xf32, #tpu.memory_space<vmem>>, vector<128x128xf32>
    %cst_14 = arith.constant dense<0.000000e+00> : vector<16x128xf32>
    %24 = tpu.matmul %21, %23, %cst_14 {dimension_numbers = #tpu.dot_dimension_numbers<[1], [0], [0], [1], [0, 0, 1, 1], [], []>} : vector<16x128xf32>, vector<128x128xf32>, vector<16x128xf32> -> vector<16x128xf32>
    %25 = arith.addf %22, %24 : vector<16x128xf32>
    %c0_15 = arith.constant 0 : index
    %c0_16 = arith.constant 0 : index
    %26 = vector.load %arg8[%c0_15, %c0_16] : memref<16x128xf32, #tpu.memory_space<vmem>>, vector<16x128xf32>
    tpu.vector_store %arg8[%c0_15, %c0_16], %25 {strides = array<i32>} : memref<16x128xf32, #tpu.memory_space<vmem>>, vector<16x128xf32>,
    %c0_i32_17 = arith.constant 0 : i32
    %27 = arith.cmpi eq, %arg1, %c0_i32_17 : i32
    %28 = arith.extui %27 : i1 to i32
    %c0_i32_18 = arith.constant 0 : i32
    %29 = arith.cmpi ne, %28, %c0_i32_18 : i32
    scf.if %29 {
      %c0_19 = arith.constant 0 : index
      %c0_20 = arith.constant 0 : index
      %30 = vector.load %arg8[%c0_19, %c0_20] : memref<16x128xf32, #tpu.memory_space<vmem>>, vector<16x128xf32>
      %c0_21 = arith.constant 0 : index
      %c0_22 = arith.constant 0 : index
      %31 = vector.load %arg7[%c0_21, %c0_22] : memref<16x128xf32, #tpu.memory_space<vmem>>, vector<16x128xf32>
      tpu.vector_store %arg7[%c0_21, %c0_22], %30 {strides = array<i32>} : memref<16x128xf32, #tpu.memory_space<vmem>>, vector<16x128xf32>,
    } else {
    }
    return
  }
  func.func @transform_0(%arg0: i32, %arg1: i32) -> (i32, i32) {
    %c0_i32 = arith.constant 0 : i32
    %c0_i32_0 = arith.constant 0 : i32
    return %arg0, %c0_i32 : i32, i32
  }
  func.func @transform_1(%arg0: i32, %arg1: i32) -> (i32, i32) {
    %c0_i32 = arith.constant 0 : i32
    %c0_i32_0 = arith.constant 0 : i32
    return %arg1, %c0_i32 : i32, i32
  }
  func.func @transform_2(%arg0: i32, %arg1: i32) -> (i32, i32) {
    %c0_i32 = arith.constant 0 : i32
    %c0_i32_0 = arith.constant 0 : i32
    return %c0_i32, %arg1 : i32, i32
  }
  func.func @transform_3(%arg0: i32, %arg1: i32) -> (i32, i32) {
    %c0_i32 = arith.constant 0 : i32
    %c0_i32_0 = arith.constant 0 : i32
    return %arg1, %c0_i32 : i32, i32
  }
  func.func @transform_4(%arg0: i32, %arg1: i32) -> (i32, i32) {
    %c0_i32 = arith.constant 0 : i32
    %c0_i32_0 = arith.constant 0 : i32
    %c0_i32_1 = arith.constant 0 : i32
    return %c0_i32, %c0_i32_0 : i32, i32
  }
  func.func @transform_5(%arg0: i32, %arg1: i32) -> (i32, i32) {
    %c0_i32 = arith.constant 0 : i32
    %c0_i32_0 = arith.constant 0 : i32
    return %arg0, %c0_i32 : i32, i32
  }
}

</mosaic_0001>

<llo_original>
// kernel: _ffn_call.1
$region0: #{_ffn_call.1}
  #allocation0 [shape = 'u32[]', space=smem, size = 0x4, offset = 0x4, fixed_abs, tag = 'smem constant byte address 0x4 - core index']
  #allocation1 [shape = 'u32[72,128]{1,0:T(1,128)}', space=vmem, size = 0x9000, scoped, tag = 'internal scratch']
  #allocation2 [shape = 'f32[16,128]{1,0:T(8,128)}', space=vmem, size = 0x2000, scoped, tag = 'scratch operand']
  %s0 = inlined_call_operand.vmem [shape: f32[16,128], index: 0, kind: input, shape index: {}]
  %s1 = inlined_call_operand.hbm [shape: f32[128,128], index: 1, kind: input, shape index: {}]
  %s2 = inlined_call_operand.vmem [shape: f32[1,128], index: 2, kind: input, shape index: {}]
  %s3 = inlined_call_operand.hbm [shape: f32[128,128], index: 3, kind: input, shape index: {}]
  %s4 = inlined_call_operand.vmem [shape: f32[1,128], index: 4, kind: input, shape index: {}]
  %s5 = inlined_call_operand.hbm [shape: f32[16,128], index: 5, kind: output, shape index: {}]
  %s6 = sld [smem:[#allocation0]]
  $region46: #{_ffn_call.1} parent=0
    _
  %s8 = ssub.s32 1, %s6
  %s9 = scalar_select 0, %s8, %s6
  $region1: #{_ffn_call.1} parent=0
    #allocation3 [shape = 'u8[65536]{0}', space=vmem, size = 0x10000, scoped, tag = 'input window, operand 1, single buffered']
    #allocation4 [shape = 's32[1]{0}', space=sflag, size = 0x4, scoped, tag = 'scoped memory for _ffn_call.1']
    #allocation5 [shape = 's32[1]{0}', space=sflag, size = 0x4, scoped, tag = 'scoped memory for _ffn_call.1']
    #allocation6 [shape = 'u8[65536]{0}', space=vmem, size = 0x10000, scoped, tag = 'input window, operand 3, single buffered']
    #allocation7 [shape = 's32[1]{0}', space=sflag, size = 0x4, scoped, tag = 'scoped memory for _ffn_call.1']
    #allocation8 [shape = 'u8[8192]{0}', space=vmem, size = 0x2000, scoped, tag = 'output window, operand 0, single buffered']
    %10 = vsyncpa [#allocation4], 0
    %11 = vsyncpa [#allocation7], 0
    %12 = vsyncpa [#allocation5], 0
    // Predicated region
    $region2: #{_ffn_call.1} parent=1 // pred_check
      _
    $region3: #{_ffn_call.1} parent=1 // pred_check_branch
      %14 = sbr.rel (0) target = $region5
    $region4: #{_ffn_call.1} parent=1 // pred_region
      _
    $region5: #{_ffn_call.1} parent=1 // pred_fallthru
      _
    // Predicated region
    $region6: #{_ffn_call.1} parent=1 // pred_check
      _
    $region7: #{_ffn_call.1} parent=1 // pred_check_branch
      %16 = sbr.rel (0) target = $region9
    $region8: #{_ffn_call.1} parent=1 // pred_region
      %18 = vsyncadd [#allocation4], 0
      %s19 = sshll.u32 %s1, 4
      %s20 = int_to_ptr.hbm [resolvable:$true] %s19
      %s21 = sshll.u32 [#allocation3], 4
      %s22 = int_to_ptr.vmem [resolvable:$true] %s21
      %27 = dma.hbm_to_vmem [thread:$0]  %s20, 2048, %s22, [#allocation4], 128, 128, 8
    $region9: #{_ffn_call.1} parent=1 // pred_fallthru
      _
    // Predicated region
    $region10: #{_ffn_call.1} parent=1 // pred_check
      _
    $region11: #{_ffn_call.1} parent=1 // pred_check_branch
      %29 = sbr.rel (0) target = $region13
    $region12: #{_ffn_call.1} parent=1 // pred_region
      _
    $region13: #{_ffn_call.1} parent=1 // pred_fallthru
      _
    // Predicated region
    $region14: #{_ffn_call.1} parent=1 // pred_check
      _
    $region15: #{_ffn_call.1} parent=1 // pred_check_branch
      %31 = sbr.rel (0) target = $region17
    $region16: #{_ffn_call.1} parent=1 // pred_region
      %33 = vsyncadd [#allocation7], 0
      %s34 = sshll.u32 %s3, 4
      %s35 = int_to_ptr.hbm [resolvable:$true] %s34
      %s36 = sshll.u32 [#allocation6], 4
      %s37 = int_to_ptr.vmem [resolvable:$true] %s36
      %42 = dma.hbm_to_vmem [thread:$0]  %s35, 2048, %s37, [#allocation7], 128, 128, 8
    $region17: #{_ffn_call.1} parent=1 // pred_fallthru
      _
    // Predicated region
    $region18: #{_ffn_call.1} parent=1 // pred_check
      _
    $region19: #{_ffn_call.1} parent=1 // pred_check_branch
      %44 = sbr.rel (0) target = $region21
    $region20: #{_ffn_call.1} parent=1 // pred_region
      _
    $region21: #{_ffn_call.1} parent=1 // pred_fallthru
      _
    // Predicated region
    $region22: #{_ffn_call.1} parent=1 // pred_check
      _
    $region23: #{_ffn_call.1} parent=1 // pred_check_branch
      %46 = sbr.rel (0) target = $region25
    $region24: #{_ffn_call.1} parent=1 // pred_region
      %48 = dma.done [#allocation4], 2048
    $region25: #{_ffn_call.1} parent=1 // pred_fallthru
      _
    // Predicated region
    $region26: #{_ffn_call.1} parent=1 // pred_check
      _
    $region27: #{_ffn_call.1} parent=1 // pred_check_branch
      %50 = sbr.rel (0) target = $region29
    $region28: #{_ffn_call.1} parent=1 // pred_region
      %52 = dma.done [#allocation7], 2048
    $region29: #{_ffn_call.1} parent=1 // pred_fallthru
      _
    %p53 = scmp.eq.s32.totalorder 0, 0
    // Predicated region
    $region30: #{_ffn_call.1} parent=1 // pred_check
      %p54 = pneg %p53
    $region31: #{_ffn_call.1} parent=1 // pred_check_branch
      %56 = sbr.rel (%p54) target = $region33
    $region32: #{_ffn_call.1} parent=1 // pred_region
      %v57 = vld [vmem:[%s4] sm:$0x1]
      %v59 = vperm.slane %v57, 0
      %61 = vst [vmem:[#allocation2] sm:$0xff] %v59
      %62 = vst [vmem:[#allocation2 + $0x8] sm:$0xff] %v59
    $region33: #{_ffn_call.1} parent=1 // pred_fallthru
      _
    %v63 = vld [vmem:[%s0] sm:$0xff]
    %v64 = vld [vmem:[%s0 + $0x8] sm:$0xff]
    %v65 = vld [vmem:[#allocation3] sm:$0xff]
    %v66 = vld [vmem:[#allocation3 + $0x8] sm:$0xff]
    %v67 = vld [vmem:[#allocation3 + $0x10] sm:$0xff]
    %v68 = vld [vmem:[#allocation3 + $0x18] sm:$0xff]
    %v69 = vld [vmem:[#allocation3 + $0x20] sm:$0xff]
    %v70 = vld [vmem:[#allocation3 + $0x28] sm:$0xff]
    %v71 = vld [vmem:[#allocation3 + $0x30] sm:$0xff]
    %v72 = vld [vmem:[#allocation3 + $0x38] sm:$0xff]
    %v73 = vld [vmem:[#allocation3 + $0x40] sm:$0xff]
    %v74 = vld [vmem:[#allocation3 + $0x48] sm:$0xff]
    %v75 = vld [vmem:[#allocation3 + $0x50] sm:$0xff]
    %v76 = vld [vmem:[#allocation3 + $0x58] sm:$0xff]
    %v77 = vld [vmem:[#allocation3 + $0x60] sm:$0xff]
    %v78 = vld [vmem:[#allocation3 + $0x68] sm:$0xff]
    %v79 = vld [vmem:[#allocation3 + $0x70] sm:$0xff]
    %v80 = vld [vmem:[#allocation3 + $0x78] sm:$0xff]
    %v81 = vld [vmem:[%s2] sm:$0x1]
    %v83 = vperm.slane %v81, 0
    %85 = vmatpush.xpose.msra.mxu0 %v80
    %86 = vmatpush.xpose.msra.mxu0 %v79
    %87 = vmatpush.xpose.msra.mxu0 %v78
    %88 = vmatpush.xpose.msra.mxu0 %v77
    %89 = vmatpush.xpose.msra.mxu0 %v76
    %90 = vmatpush.xpose.msra.mxu0 %v75
    %91 = vmatpush.xpose.msra.mxu0 %v74
    %92 = vmatpush.xpose.msra.mxu0 %v73
    %93 = vmatpush.xpose.msra.mxu0 %v72
    %94 = vmatpush.xpose.msra.mxu0 %v71
    %95 = vmatpush.xpose.msra.mxu0 %v70
    %96 = vmatpush.xpose.msra.mxu0 %v69
    %97 = vmatpush.xpose.msra.mxu0 %v68
    %98 = vmatpush.xpose.msra.mxu0 %v67
    %99 = vmatpush.xpose.msra.mxu0 %v66
    %100 = vmatpush.xpose.msra.mxu0 %v65
    %101 = vmatmul.f32.gmra.mxu0 %v63
    %v102 = vpop.f32.mrf.mxu0
    %v103 = vadd.f32 %v83, %v102
    %104 = vmatmul.f32.gmra.mxu0 %v64
    %v105 = vpop.f32.mrf.mxu0
    %v106 = vadd.f32 %v83, %v105
    %107 = vdwg.mxu0
    %v108 = vmul.f32 %v103, 0.5
    %v109 = vmul.f32 %v106, 0.5
    %v110 = vmul.f32 %v103, %v103
    %v111 = vmul.f32 %v106, %v106
    %v112 = vmul.f32 %v110, %v103
    %v113 = vmul.f32 %v111, %v106
    %v114 = vmul.f32 %v112, 0.044715
    %v115 = vmul.f32 %v113, 0.044715
    %v116 = vadd.f32 %v103, %v114
    %v117 = vadd.f32 %v106, %v115
    %v118 = vmul.f32 %v116, 0.7978846
    %v119 = vmul.f32 %v117, 0.7978846
    %v120 = vtanh.pop %v118
    %v121 = vtanh.pop %v119
    %v122 = vadd.f32 %v120, 1.0
    %v123 = vadd.f32 %v121, 1.0
    %v124 = vmul.f32 %v108, %v122
    %v125 = vmul.f32 %v109, %v123
    %v126 = vld [vmem:[#allocation2] sm:$0xff]
    %v127 = vld [vmem:[#allocation2 + $0x8] sm:$0xff]
    %v128 = vld [vmem:[#allocation6] sm:$0xff]
    %v129 = vld [vmem:[#allocation6 + $0x8] sm:$0xff]
    %v130 = vld [vmem:[#allocation6 + $0x10] sm:$0xff]
    %v131 = vld [vmem:[#allocation6 + $0x18] sm:$0xff]
    %v132 = vld [vmem:[#allocation6 + $0x20] sm:$0xff]
    %v133 = vld [vmem:[#allocation6 + $0x28] sm:$0xff]
    %v134 = vld [vmem:[#allocation6 + $0x30] sm:$0xff]
    %v135 = vld [vmem:[#allocation6 + $0x38] sm:$0xff]
    %v136 = vld [vmem:[#allocation6 + $0x40] sm:$0xff]
    %v137 = vld [vmem:[#allocation6 + $0x48] sm:$0xff]
    %v138 = vld [vmem:[#allocation6 + $0x50] sm:$0xff]
    %v139 = vld [vmem:[#allocation6 + $0x58] sm:$0xff]
    %v140 = vld [vmem:[#allocation6 + $0x60] sm:$0xff]
    %v141 = vld [vmem:[#allocation6 + $0x68] sm:$0xff]
    %v142 = vld [vmem:[#allocation6 + $0x70] sm:$0xff]
    %v143 = vld [vmem:[#allocation6 + $0x78] sm:$0xff]
    %144 = vmatpush.msra.mxu0 %v143
    %145 = vmatpush.msra.mxu0 %v142
    %146 = vmatpush.msra.mxu0 %v141
    %147 = vmatpush.msra.mxu0 %v140
    %148 = vmatpush.msra.mxu0 %v139
    %149 = vmatpush.msra.mxu0 %v138
    %150 = vmatpush.msra.mxu0 %v137
    %151 = vmatpush.msra.mxu0 %v136
    %152 = vmatpush.msra.mxu0 %v135
    %153 = vmatpush.msra.mxu0 %v134
    %154 = vmatpush.msra.mxu0 %v133
    %155 = vmatpush.msra.mxu0 %v132
    %156 = vmatpush.msra.mxu0 %v131
    %157 = vmatpush.msra.mxu0 %v130
    %158 = vmatpush.msra.mxu0 %v129
    %159 = vmatpush.msra.mxu0 %v128
    %160 = vmatmul.f32.gmra.mxu0 %v124
    %v161 = vpop.f32.mrf.mxu0
    %v162 = vadd.f32 0.0, %v161
    %163 = vmatmul.f32.gmra.mxu0 %v125
    %v164 = vpop.f32.mrf.mxu0
    %v165 = vadd.f32 0.0, %v164
    %166 = vdwg.mxu0
    %v167 = vadd.f32 %v126, %v162
    %v168 = vadd.f32 %v127, %v165
    %169 = vst [vmem:[#allocation2] sm:$0xff] %v167
    %170 = vst [vmem:[#allocation2 + $0x8] sm:$0xff] %v168
    // Predicated region
    $region34: #{_ffn_call.1} parent=1 // pred_check
      %p171 = pneg %p53
    $region35: #{_ffn_call.1} parent=1 // pred_check_branch
      %173 = sbr.rel (%p171) target = $region37
    $region36: #{_ffn_call.1} parent=1 // pred_region
      %v174 = vld [vmem:[#allocation2] sm:$0xff]
      %v175 = vld [vmem:[#allocation2 + $0x8] sm:$0xff]
      %176 = vst [vmem:[#allocation8] sm:$0xff] %v174
      %177 = vst [vmem:[#allocation8 + $0x8] sm:$0xff] %v175
    $region37: #{_ffn_call.1} parent=1 // pred_fallthru
      _
    // Predicated region
    $region38: #{_ffn_call.1} parent=1 // pred_check
      _
    $region39: #{_ffn_call.1} parent=1 // pred_check_branch
      %179 = sbr.rel (0) target = $region41
    $region40: #{_ffn_call.1} parent=1 // pred_region
      %181 = vsyncadd [#allocation5], 0
      %s182 = sshll.u32 [#allocation8], 4
      %s183 = int_to_ptr.vmem [resolvable:$true] %s182
      %s184 = sshll.u32 %s5, 4
      %s185 = int_to_ptr.hbm [resolvable:$true] %s184
      %190 = dma.vmem_to_hbm [thread:$0]  %s183, 256, %s185, [#allocation5], 128, 128, 8
    $region41: #{_ffn_call.1} parent=1 // pred_fallthru
      _
    // Predicated region
    $region42: #{_ffn_call.1} parent=1 // pred_check
      _
    $region43: #{_ffn_call.1} parent=1 // pred_check_branch
      %192 = sbr.rel (0) target = $region45
    $region44: #{_ffn_call.1} parent=1 // pred_region
      %194 = dma.done [#allocation5], 256
    $region45: #{_ffn_call.1} parent=1 // pred_fallthru
      _
    %195 = vsyncpa [#allocation4], 1
    %196 = vsyncpa [#allocation7], 1
    %197 = vsyncpa [#allocation5], 1

</llo_original>
